<compile_context>
chip_gen: v7x
topology: tpu7x:2x2x1
jax: 0.10.0
libtpu: 0.0.40
codegen_flags: <defaults>
</compile_context>

<pallas_src>
import functools

import jax
import jax.numpy as jnp
from jax.experimental import pallas as pl
from jax.experimental.pallas import tpu as pltpu

NEG_SLOPE = 0.01  # torch.nn.LeakyReLU default
LANE = 128
SUBLANE = 8


def _round_up(x: int, m: int) -> int:
    return (x + m - 1) // m * m


def _chip_budget():
    """Returns (usable VMEM budget in bytes, #TensorCores). Conservative fallbacks."""
    vmem_phys = 64 << 20          # v7x per-TC VMEM (smallest across v5e/v6e/v7x)
    n_tc = 1
    try:
        info = pltpu.get_tpu_info()
        vmem_phys = int(getattr(info, "vmem_capacity_bytes", vmem_phys))
    except Exception:
        pass
    try:
        kind = (jax.devices()[0].device_kind or "").lower()
        if "v7" in kind:
            n_tc = 2
    except Exception:
        pass
    # ~48 MiB budget on v7x fallback, ~96 MiB on 128-MiB chips (v5e/v6e)
    budget = min((vmem_phys * 3) // 4, 100 << 20)
    return budget, n_tc


def _make_kernel(num_layers: int, w_pad: int):
    has_rest = num_layers > 1

    def kernel(x_ref, w0bwd_ref, b_all_ref, *rest):
        if has_rest:
            w_rest_ref, w_fwd_ref, b_out_ref, f_out_ref = rest
        else:
            w_fwd_ref, b_out_ref, f_out_ref = rest

        x_bf = x_ref[...].astype(jnp.bfloat16)

        # --- fused (first FC layer | backward projection): shared LHS x ---
        hb = jnp.dot(x_bf, w0bwd_ref[...], preferred_element_type=jnp.float32)
        h = hb[:, :w_pad]        # first-layer pre-activation (bias added below)
        bproj = hb[:, w_pad:]    # backward_projection(x), no bias

        # --- FC stack: bias + LeakyReLU, remaining Linear layers ---
        h = h + b_all_ref[0]
        h = jnp.maximum(h, NEG_SLOPE * h)
        for l in range(1, num_layers):
            h = jnp.dot(h.astype(jnp.bfloat16), w_rest_ref[l - 1],
                        preferred_element_type=jnp.float32)
            h = h + b_all_ref[l]
            h = jnp.maximum(h, NEG_SLOPE * h)

        # --- forward projection (no bias) ---
        f = jnp.dot(h.astype(jnp.bfloat16), w_fwd_ref[...],
                    preferred_element_type=jnp.float32)

        # --- residual + ReLU (uses ORIGINAL x via bproj) ---
        b = jnp.maximum(h + bproj, 0.0)

        b_out_ref[...] = b.astype(b_out_ref.dtype)
        f_out_ref[...] = f.astype(f_out_ref.dtype)

    return kernel


def pack_params(params, *, num_layers: int):
    """Pad to lane-dense widths, stack, and cast matmul weights to bf16.
    Call ONCE, outside the per-step path."""
    size_in, layer_width = params["fc_w"][0].shape
    size_out = params["w_fwd"].shape[1]
    W_pad = _round_up(layer_width, LANE)
    S_pad = _round_up(size_out, LANE)

    def pad2(a, rows, cols):
        return jnp.pad(a, ((0, rows - a.shape[0]), (0, cols - a.shape[1])))

    w0 = pad2(params["fc_w"][0], size_in, W_pad)
    w_bwd = pad2(params["w_bwd"], size_in, W_pad)
    packed = {
        # first layer and backward projection fused along the output dim
        "w0bwd": jnp.concatenate([w0, w_bwd], axis=1).astype(jnp.bfloat16),
        "b_all": jnp.stack(
            [jnp.pad(params["fc_b"][l], (0, W_pad - layer_width))
             for l in range(num_layers)]
        ).reshape(num_layers, 1, W_pad).astype(jnp.float32),
        "w_fwd": pad2(params["w_fwd"], W_pad, S_pad).astype(jnp.bfloat16),
    }
    if num_layers > 1:
        packed["w_rest"] = jnp.stack(
            [pad2(params["fc_w"][l], W_pad, W_pad)
             for l in range(1, num_layers)]).astype(jnp.bfloat16)
    return packed


def fc_block_forward(x, packed, *, num_layers: int, layer_width: int,
                     size_out: int, tile_b=None, out_dtype=None):
    """Fused FCBlock forward. Returns (b, f) with shapes
    (B, layer_width) and (B, size_out)."""
    B, size_in = x.shape
    W_pad = packed["b_all"].shape[-1]
    S_pad = packed["w_fwd"].shape[-1]
    out_dtype = x.dtype if out_dtype is None else out_dtype
    out_isize = jnp.dtype(out_dtype).itemsize
    x_isize = x.dtype.itemsize

    vmem_budget, n_tc = _chip_budget()

    # Resident weights are DMA'd once (constant block index) but still get
    # double-buffered VMEM allocations by the default pipeline.
    weight_bytes = sum(int(v.size) * v.dtype.itemsize for v in packed.values())

    def tile_vmem(tb):
        io = tb * (size_in * x_isize + (W_pad + S_pad) * out_isize)
        return 2 * weight_bytes + 2 * io + (4 << 20)   # + scratch headroom

    # --- balanced batch tiling: pick n_tiles first, then tb (<8 pad rows/tile) ---
    B_pad8 = _round_up(B, SUBLANE)

    def plan(target):
        n = max(1, pl.cdiv(B_pad8, target))
        return n, _round_up(pl.cdiv(B_pad8, n), SUBLANE)

    if tile_b is None:
        target = 1024 if vmem_budget >= (80 << 20) else 512
    else:
        target = max(SUBLANE, int(tile_b))
    n_tiles, tb = plan(target)

    # Feed both TensorCores on multi-TC chips (v7x), but only with >=128-row
    # tiles; single-TC chips (v5e/v6e) never get an extra grid step.
    if n_tc >= 2:
        if n_tiles == 1 and tb >= 2 * LANE:
            n_tiles, tb = plan(_round_up(pl.cdiv(B_pad8, 2), SUBLANE))
        elif (n_tiles > 1 and n_tiles % 2 == 1
              and pl.cdiv(B_pad8, n_tiles + 1) >= LANE):
            n_tiles, tb = (n_tiles + 1,
                           _round_up(pl.cdiv(B_pad8, n_tiles + 1), SUBLANE))

    # Shrink (re-balance) tb until resident weights + double-buffered I/O fit.
    while tile_vmem(tb) > vmem_budget and tb > SUBLANE:
        n_tiles, tb = plan(max(SUBLANE, tb // 2))
    if tile_vmem(tb) > vmem_budget:
        raise ValueError(
            "FCBlock weights alone exceed the VMEM budget; reduce layer_width"
            " / num_layers or add a K-tiled variant.")

    B_pad = n_tiles * tb
    x_pad = jnp.pad(x, ((0, B_pad - B), (0, 0)))

    full2 = lambda i: (0, 0)
    full3 = lambda i: (0, 0, 0)

    in_specs = [
        pl.BlockSpec((tb, size_in), lambda i: (i, 0)),          # x tile
        pl.BlockSpec((size_in, 2 * W_pad), full2),              # [w0 | w_bwd]
        pl.BlockSpec((num_layers, 1, W_pad), full3),            # packed biases
    ]
    args = [x_pad, packed["w0bwd"], packed["b_all"]]
    if num_layers > 1:
        in_specs.append(pl.BlockSpec((num_layers - 1, W_pad, W_pad), full3))
        args.append(packed["w_rest"])
    in_specs.append(pl.BlockSpec((W_pad, S_pad), full2))        # fwd projection
    args.append(packed["w_fwd"])

    out_specs = [
        pl.BlockSpec((tb, W_pad), lambda i: (i, 0)),            # b (lane-dense)
        pl.BlockSpec((tb, S_pad), lambda i: (i, 0)),            # f (lane-dense)
    ]
    out_shape = [
        jax.ShapeDtypeStruct((B_pad, W_pad), out_dtype),
        jax.ShapeDtypeStruct((B_pad, S_pad), out_dtype),
    ]

    # advisory cost estimate for the XLA scheduler
    flops = 2 * B_pad * (size_in * 2 * W_pad
                         + (num_layers - 1) * W_pad * W_pad
                         + W_pad * S_pad)
    io_bytes = B_pad * (size_in * x_isize + (W_pad + S_pad) * out_isize)
    cost = pl.CostEstimate(flops=flops, transcendentals=0,
                           bytes_accessed=io_bytes + weight_bytes)

    vmem_limit = int(min(max(tile_vmem(tb), 16 << 20), vmem_budget))

    b_pad, f_pad = pl.pallas_call(
        _make_kernel(num_layers, W_pad),
        out_shape=out_shape,
        grid_spec=pltpu.PrefetchScalarGridSpec(
            num_scalar_prefetch=0,
            grid=(n_tiles,),
            in_specs=in_specs,
            out_specs=out_specs,
        ),
        compiler_params=pltpu.CompilerParams(
            dimension_semantics=("parallel",),
            vmem_limit_bytes=vmem_limit),
        cost_estimate=cost,
    )(*args)

    # strip batch / lane padding
    return b_pad[:B, :layer_width], f_pad[:B, :size_out]


def init_params(key, *, num_layers, layer_width, size_in, size_out):
    """Deterministic synthetic parameters matching FCBlock.__init__ shapes.
    Linear weights stored as (in, out) (transposed vs. PyTorch)."""
    keys = jax.random.split(key, 2 * num_layers + 2)
    fc_w, fc_b = [], []
    dims_in = [size_in] + [layer_width] * (num_layers - 1)
    for l in range(num_layers):
        fc_w.append(jax.random.normal(
            keys[2 * l], (dims_in[l], layer_width), jnp.float32) * 0.05)
        fc_b.append(jax.random.normal(
            keys[2 * l + 1], (layer_width,), jnp.float32) * 0.05)
    w_fwd = jax.random.normal(
        keys[-2], (layer_width, size_out), jnp.float32) * 0.05
    w_bwd = jax.random.normal(
        keys[-1], (size_in, layer_width), jnp.float32) * 0.05
    return {"fc_w": fc_w, "fc_b": fc_b, "w_fwd": w_fwd, "w_bwd": w_bwd}


def _reference(x, params, num_layers):
    h = x
    for l in range(num_layers):
        h = h @ params["fc_w"][l] + params["fc_b"][l]
        h = jnp.where(h > 0, h, NEG_SLOPE * h)
    f = h @ params["w_fwd"]
    b = jnp.maximum(h + x @ params["w_bwd"], 0.0)
    return b, f


if __name__ == "__main__":
    num_layers, layer_width = 2, 64
    size_in, size_out = 32, 48
    batch = 16  # dropout = 0.0 (inference)

    key = jax.random.PRNGKey(0)
    kx, kp = jax.random.split(key)
    x = jax.random.normal(kx, (batch, size_in), jnp.float32)
    params = init_params(kp, num_layers=num_layers, layer_width=layer_width,
                         size_in=size_in, size_out=size_out)

    # one-time weight packing (pad / stack / bf16 cast) outside the hot path
    packed = pack_params(params, num_layers=num_layers)

    fwd = jax.jit(functools.partial(
        fc_block_forward, num_layers=num_layers,
        layer_width=layer_width, size_out=size_out))
    b, f = fwd(x, packed)
    jax.block_until_ready((b, f))

    b_ref, f_ref = _reference(x, params, num_layers)
    assert b.shape == (batch, layer_width) and f.shape == (batch, size_out)
    # bf16 MXU operands with f32 accumulation -> tolerances loosened vs the
    # f32 reference (observed error budget here is ~1e-3 absolute).
    assert jnp.allclose(b, b_ref, atol=2e-2, rtol=2e-2), \
        float(jnp.max(jnp.abs(b - b_ref)))
    assert jnp.allclose(f, f_ref, atol=2e-2, rtol=2e-2), \
        float(jnp.max(jnp.abs(f - f_ref)))
    print("KERNEL_OK")
</pallas_src>

<mosaic_0001>
module attributes {stable_mosaic.version = 11 : i64} {
  func.func @kernel(%arg0: i32, %arg1: memref<16x32xf32, #tpu.memory_space<vmem>>, %arg2: memref<32x256xbf16, #tpu.memory_space<vmem>>, %arg3: memref<2x1x128xf32, #tpu.memory_space<vmem>>, %arg4: memref<1x128x128xbf16, #tpu.memory_space<vmem>>, %arg5: memref<128x128xbf16, #tpu.memory_space<vmem>>, %arg6: memref<16x128xf32, #tpu.memory_space<vmem>>, %arg7: memref<16x128xf32, #tpu.memory_space<vmem>>) attributes {dimension_semantics = [#tpu.dimension_semantics<parallel>], iteration_bounds = array<i64: 1>, scalar_prefetch = 0 : i64, scratch_operands = 0 : i64, tpu.core_type = #tpu.core_type<tc>, window_params = [{transform_indices = @transform_0, window_bounds = array<i64: 16, 32>}, {pipeline_mode = #tpu.pipeline_mode<synchronous>, transform_indices = @transform_1, window_bounds = array<i64: 32, 256>}, {pipeline_mode = #tpu.pipeline_mode<synchronous>, transform_indices = @transform_2, window_bounds = array<i64: 2, 1, 128>}, {pipeline_mode = #tpu.pipeline_mode<synchronous>, transform_indices = @transform_3, window_bounds = array<i64: 1, 128, 128>}, {pipeline_mode = #tpu.pipeline_mode<synchronous>, transform_indices = @transform_4, window_bounds = array<i64: 128, 128>}, {transform_indices = @transform_5, window_bounds = array<i64: 16, 128>}, {transform_indices = @transform_6, window_bounds = array<i64: 16, 128>}]} {
    %c0 = arith.constant 0 : index
    %c0_0 = arith.constant 0 : index
    %0 = vector.load %arg1[%c0, %c0_0] : memref<16x32xf32, #tpu.memory_space<vmem>>, vector<16x32xf32>
    %1 = arith.truncf %0 : vector<16x32xf32> to vector<16x32xbf16>
    %c0_1 = arith.constant 0 : index
    %c0_2 = arith.constant 0 : index
    %2 = vector.load %arg2[%c0_1, %c0_2] : memref<32x256xbf16, #tpu.memory_space<vmem>>, vector<32x256xbf16>
    %cst = arith.constant dense<0.000000e+00> : vector<16x256xf32>
    %3 = tpu.matmul %1, %2, %cst {dimension_numbers = #tpu.dot_dimension_numbers<[1], [0], [0], [1], [0, 0, 1, 1], [], []>} : vector<16x32xbf16>, vector<32x256xbf16>, vector<16x256xf32> -> vector<16x256xf32>
    %4 = vector.extract_strided_slice %3 {offsets = [0, 0], sizes = [16, 128], strides = [1, 1]} : vector<16x256xf32> to vector<16x128xf32>
    %5 = vector.extract_strided_slice %3 {offsets = [0, 128], sizes = [16, 128], strides = [1, 1]} : vector<16x256xf32> to vector<16x128xf32>
    %c0_3 = arith.constant 0 : index
    %c0_4 = arith.constant 0 : index
    %c0_5 = arith.constant 0 : index
    %6 = vector.load %arg3[%c0_3, %c0_4, %c0_5] : memref<2x1x128xf32, #tpu.memory_space<vmem>>, vector<1x1x128xf32>
    %7 = vector.shape_cast %6 : vector<1x1x128xf32> to vector<1x128xf32>
    %8 = vector.broadcast %7 : vector<1x128xf32> to vector<16x128xf32>
    %9 = arith.addf %4, %8 : vector<16x128xf32>
    %cst_6 = arith.constant 0.00999999977 : f32
    %10 = vector.broadcast %cst_6 : f32 to vector<16x128xf32>
    %11 = arith.mulf %10, %9 : vector<16x128xf32>
    %12 = arith.maximumf %9, %11 : vector<16x128xf32>
    %13 = arith.truncf %12 : vector<16x128xf32> to vector<16x128xbf16>
    %c0_7 = arith.constant 0 : index
    %c0_8 = arith.constant 0 : index
    %c0_9 = arith.constant 0 : index
    %14 = vector.load %arg4[%c0_7, %c0_8, %c0_9] : memref<1x128x128xbf16, #tpu.memory_space<vmem>>, vector<1x128x128xbf16>
    %15 = vector.shape_cast %14 : vector<1x128x128xbf16> to vector<128x128xbf16>
    %cst_10 = arith.constant dense<0.000000e+00> : vector<16x128xf32>
    %16 = tpu.matmul %13, %15, %cst_10 {dimension_numbers = #tpu.dot_dimension_numbers<[1], [0], [0], [1], [0, 0, 1, 1], [], []>} : vector<16x128xbf16>, vector<128x128xbf16>, vector<16x128xf32> -> vector<16x128xf32>
    %c1 = arith.constant 1 : index
    %c0_11 = arith.constant 0 : index
    %c0_12 = arith.constant 0 : index
    %17 = vector.load %arg3[%c1, %c0_11, %c0_12] : memref<2x1x128xf32, #tpu.memory_space<vmem>>, vector<1x1x128xf32>
    %18 = vector.shape_cast %17 : vector<1x1x128xf32> to vector<1x128xf32>
    %19 = vector.broadcast %18 : vector<1x128xf32> to vector<16x128xf32>
    %20 = arith.addf %16, %19 : vector<16x128xf32>
    %cst_13 = arith.constant 0.00999999977 : f32
    %21 = vector.broadcast %cst_13 : f32 to vector<16x128xf32>
    %22 = arith.mulf %21, %20 : vector<16x128xf32>
    %23 = arith.maximumf %20, %22 : vector<16x128xf32>
    %24 = arith.truncf %23 : vector<16x128xf32> to vector<16x128xbf16>
    %c0_14 = arith.constant 0 : index
    %c0_15 = arith.constant 0 : index
    %25 = vector.load %arg5[%c0_14, %c0_15] : memref<128x128xbf16, #tpu.memory_space<vmem>>, vector<128x128xbf16>
    %cst_16 = arith.constant dense<0.000000e+00> : vector<16x128xf32>
    %26 = tpu.matmul %24, %25, %cst_16 {dimension_numbers = #tpu.dot_dimension_numbers<[1], [0], [0], [1], [0, 0, 1, 1], [], []>} : vector<16x128xbf16>, vector<128x128xbf16>, vector<16x128xf32> -> vector<16x128xf32>
    %27 = arith.addf %23, %5 : vector<16x128xf32>
    %cst_17 = arith.constant 0.000000e+00 : f32
    %28 = vector.broadcast %cst_17 : f32 to vector<16x128xf32>
    %29 = arith.maximumf %27, %28 : vector<16x128xf32>
    %c0_18 = arith.constant 0 : index
    %c0_19 = arith.constant 0 : index
    %30 = vector.load %arg6[%c0_18, %c0_19] : memref<16x128xf32, #tpu.memory_space<vmem>>, vector<16x128xf32>
    tpu.vector_store %arg6[%c0_18, %c0_19], %29 {strides = array<i32>} : memref<16x128xf32, #tpu.memory_space<vmem>>, vector<16x128xf32>,
    %c0_20 = arith.constant 0 : index
    %c0_21 = arith.constant 0 : index
    %31 = vector.load %arg7[%c0_20, %c0_21] : memref<16x128xf32, #tpu.memory_space<vmem>>, vector<16x128xf32>
    tpu.vector_store %arg7[%c0_20, %c0_21], %26 {strides = array<i32>} : memref<16x128xf32, #tpu.memory_space<vmem>>, vector<16x128xf32>,
    return
  }
  func.func @transform_0(%arg0: i32) -> (i32, i32) {
    %c0_i32 = arith.constant 0 : i32
    %c0_i32_0 = arith.constant 0 : i32
    return %arg0, %c0_i32 : i32, i32
  }
  func.func @transform_1(%arg0: i32) -> (i32, i32) {
    %c0_i32 = arith.constant 0 : i32
    %c0_i32_0 = arith.constant 0 : i32
    %c0_i32_1 = arith.constant 0 : i32
    return %c0_i32, %c0_i32_0 : i32, i32
  }
  func.func @transform_2(%arg0: i32) -> (i32, i32, i32) {
    %c0_i32 = arith.constant 0 : i32
    %c0_i32_0 = arith.constant 0 : i32
    %c0_i32_1 = arith.constant 0 : i32
    %c0_i32_2 = arith.constant 0 : i32
    return %c0_i32, %c0_i32_0, %c0_i32_1 : i32, i32, i32
  }
  func.func @transform_3(%arg0: i32) -> (i32, i32, i32) {
    %c0_i32 = arith.constant 0 : i32
    %c0_i32_0 = arith.constant 0 : i32
    %c0_i32_1 = arith.constant 0 : i32
    %c0_i32_2 = arith.constant 0 : i32
    return %c0_i32, %c0_i32_0, %c0_i32_1 : i32, i32, i32
  }
  func.func @transform_4(%arg0: i32) -> (i32, i32) {
    %c0_i32 = arith.constant 0 : i32
    %c0_i32_0 = arith.constant 0 : i32
    %c0_i32_1 = arith.constant 0 : i32
    return %c0_i32, %c0_i32_0 : i32, i32
  }
  func.func @transform_5(%arg0: i32) -> (i32, i32) {
    %c0_i32 = arith.constant 0 : i32
    %c0_i32_0 = arith.constant 0 : i32
    return %arg0, %c0_i32 : i32, i32
  }
  func.func @transform_6(%arg0: i32) -> (i32, i32) {
    %c0_i32 = arith.constant 0 : i32
    %c0_i32_0 = arith.constant 0 : i32
    return %arg0, %c0_i32 : i32, i32
  }
}

</mosaic_0001>

<llo_original>
// kernel: fc_block_forward.1
$region0: #{fc_block_forward.1}
  #allocation0 [shape = 'u32[]', space=smem, size = 0x4, offset = 0x4, fixed_abs, tag = 'smem constant byte address 0x4 - core index']
  #allocation1 [shape = 'u32[144,128]{1,0:T(1,128)}', space=vmem, size = 0x12000, scoped, tag = 'internal scratch']
  %s0 = inlined_call_operand.hbm [shape: f32[16,32], index: 0, kind: input, shape index: {}]
  %s1 = inlined_call_operand.hbm [shape: bf16[32,256], index: 1, kind: input, shape index: {}]
  %s2 = inlined_call_operand.vmem [shape: f32[2,1,128], index: 2, kind: input, shape index: {}]
  %s3 = inlined_call_operand.hbm [shape: bf16[1,128,128], index: 3, kind: input, shape index: {}]
  %s4 = inlined_call_operand.hbm [shape: bf16[128,128], index: 4, kind: input, shape index: {}]
  %s5 = inlined_call_operand.hbm [shape: f32[16,128], index: 5, kind: output, shape index: {0}]
  %s6 = inlined_call_operand.hbm [shape: f32[16,128], index: 6, kind: output, shape index: {1}]
  %7 = xla_tuple %s5, %s6
  %s8 = sld [smem:[#allocation0]]
  $region54: #{fc_block_forward.1} parent=0
    _
  %s10 = ssub.s32 1, %s8
  %s11 = scalar_select 0, %s10, %s8
  $region1: #{fc_block_forward.1} parent=0
    #allocation2 [shape = 'u8[8192]{0}', space=vmem, size = 0x2000, scoped, tag = 'input window, operand 0, single buffered']
    #allocation3 [shape = 's32[1]{0}', space=sflag, size = 0x4, scoped, tag = 'scoped memory for fc_block_forward.1']
    #allocation4 [shape = 's32[1]{0}', space=sflag, size = 0x4, scoped, tag = 'scoped memory for fc_block_forward.1']
    #allocation5 [shape = 'u8[16384]{0}', space=vmem, size = 0x4000, scoped, tag = 'input window, operand 1, single buffered']
    #allocation6 [shape = 's32[1]{0}', space=sflag, size = 0x4, scoped, tag = 'scoped memory for fc_block_forward.1']
    #allocation7 [shape = 'u8[32768]{0}', space=vmem, size = 0x8000, scoped, tag = 'input window, operand 3, single buffered']
    #allocation8 [shape = 'u8[32768]{0}', space=vmem, size = 0x8000, scoped, tag = 'input window, operand 4, single buffered']
    #allocation9 [shape = 's32[1]{0}', space=sflag, size = 0x4, scoped, tag = 'scoped memory for fc_block_forward.1']
    #allocation10 [shape = 'u8[8192]{0}', space=vmem, size = 0x2000, scoped, tag = 'output window, operand 0, single buffered']
    #allocation11 [shape = 'u8[8192]{0}', space=vmem, size = 0x2000, scoped, tag = 'output window, operand 1, single buffered']
    #allocation12 [shape = 's32[1]{0}', space=sflag, size = 0x4, scoped, tag = 'scoped memory for fc_block_forward.1']
    %12 = vsyncpa [#allocation3], 0
    %13 = vsyncpa [#allocation6], 0
    %14 = vsyncpa [#allocation9], 0
    %15 = vsyncpa [#allocation4], 0
    %16 = vsyncpa [#allocation12], 0
    // Predicated region
    $region2: #{fc_block_forward.1} parent=1 // pred_check
      _
    $region3: #{fc_block_forward.1} parent=1 // pred_check_branch
      %18 = sbr.rel (0) target = $region5
    $region4: #{fc_block_forward.1} parent=1 // pred_region
      %s20 = ssub.s32 256, 256
      %21 = vsyncadd [#allocation3], %s20
      %s22 = sshll.u32 [#allocation2], 4
      %s23 = int_to_ptr.vmem [resolvable:$true] %s22
      %28 = dma.hbm_to_vmem [thread:$0]  %s0, 256, %s23, [#allocation3], 128, 128, 8
    $region5: #{fc_block_forward.1} parent=1 // pred_fallthru
      _
    // Predicated region
    $region6: #{fc_block_forward.1} parent=1 // pred_check
      _
    $region7: #{fc_block_forward.1} parent=1 // pred_check_branch
      %30 = sbr.rel (0) target = $region9
    $region8: #{fc_block_forward.1} parent=1 // pred_region
      %s32 = ssub.s32 512, 512
      %33 = vsyncadd [#allocation6], %s32
      %s34 = sshll.u32 [#allocation5], 4
      %s35 = int_to_ptr.vmem [resolvable:$true] %s34
      %40 = dma.hbm_to_vmem [thread:$0]  %s1, 512, %s35, [#allocation6], 128, 128, 8
    $region9: #{fc_block_forward.1} parent=1 // pred_fallthru
      _
    // Predicated region
    $region10: #{fc_block_forward.1} parent=1 // pred_check
      _
    $region11: #{fc_block_forward.1} parent=1 // pred_check_branch
      %42 = sbr.rel (0) target = $region13
    $region12: #{fc_block_forward.1} parent=1 // pred_region
      _
    $region13: #{fc_block_forward.1} parent=1 // pred_fallthru
      _
    // Predicated region
    $region14: #{fc_block_forward.1} parent=1 // pred_check
      _
    $region15: #{fc_block_forward.1} parent=1 // pred_check_branch
      %44 = sbr.rel (0) target = $region17
    $region16: #{fc_block_forward.1} parent=1 // pred_region
      %s46 = ssub.s32 1024, 1024
      %47 = vsyncadd [#allocation6], %s46
      %s48 = sshll.u32 [#allocation7], 4
      %s49 = int_to_ptr.vmem [resolvable:$true] %s48
      %54 = dma.hbm_to_vmem [thread:$0]  %s3, 1024, %s49, [#allocation6], 64, 64, 4
    $region17: #{fc_block_forward.1} parent=1 // pred_fallthru
      _
    // Predicated region
    $region18: #{fc_block_forward.1} parent=1 // pred_check
      _
    $region19: #{fc_block_forward.1} parent=1 // pred_check_branch
      %56 = sbr.rel (0) target = $region21
    $region20: #{fc_block_forward.1} parent=1 // pred_region
      %s58 = ssub.s32 1024, 1024
      %59 = vsyncadd [#allocation9], %s58
      %s60 = sshll.u32 [#allocation8], 4
      %s61 = int_to_ptr.vmem [resolvable:$true] %s60
      %66 = dma.hbm_to_vmem [thread:$0]  %s4, 1024, %s61, [#allocation9], 64, 64, 4
    $region21: #{fc_block_forward.1} parent=1 // pred_fallthru
      _
    // Predicated region
    $region22: #{fc_block_forward.1} parent=1 // pred_check
      _
    $region23: #{fc_block_forward.1} parent=1 // pred_check_branch
      %68 = sbr.rel (0) target = $region25
    $region24: #{fc_block_forward.1} parent=1 // pred_region
      %69 = dma.done [#allocation3], 256
    $region25: #{fc_block_forward.1} parent=1 // pred_fallthru
      _
    // Predicated region
    $region26: #{fc_block_forward.1} parent=1 // pred_check
      _
    $region27: #{fc_block_forward.1} parent=1 // pred_check_branch
      %71 = sbr.rel (0) target = $region29
    $region28: #{fc_block_forward.1} parent=1 // pred_region
      %72 = dma.done [#allocation6], 512
    $region29: #{fc_block_forward.1} parent=1 // pred_fallthru
      _
    // Predicated region
    $region30: #{fc_block_forward.1} parent=1 // pred_check
      _
    $region31: #{fc_block_forward.1} parent=1 // pred_check_branch
      %74 = sbr.rel (0) target = $region33
    $region32: #{fc_block_forward.1} parent=1 // pred_region
      %75 = dma.done [#allocation6], 1024
    $region33: #{fc_block_forward.1} parent=1 // pred_fallthru
      _
    // Predicated region
    $region34: #{fc_block_forward.1} parent=1 // pred_check
      _
    $region35: #{fc_block_forward.1} parent=1 // pred_check_branch
      %77 = sbr.rel (0) target = $region37
    $region36: #{fc_block_forward.1} parent=1 // pred_region
      %78 = dma.done [#allocation9], 1024
    $region37: #{fc_block_forward.1} parent=1 // pred_fallthru
      _
    %v80 = vld [vmem:[#allocation2] sm:$0xff]
    %v81 = vld [vmem:[#allocation2 + $0x8] sm:$0xff]
    %v82 = vpack.c.bf16 %v81, %v80
    %v83 = vld [vmem:[#allocation5] sm:$0xff]
    %v84 = vld [vmem:[#allocation5 + $0x8] sm:$0xff]
    %v85 = vld [vmem:[#allocation5 + $0x10] sm:$0xff]
    %v86 = vld [vmem:[#allocation5 + $0x18] sm:$0xff]
    %v91 = vunpack.c.l.b16 %v83
    %v92 = vunpack.c.h.b16 %v83
    %v93 = vunpack.c.l.b16 %v84
    %v94 = vunpack.c.h.b16 %v84
    %v95 = vunpack.c.l.b16 %v85
    %v96 = vunpack.c.h.b16 %v85
    %v97 = vunpack.c.l.b16 %v86
    %v98 = vunpack.c.h.b16 %v86
    %v99 = vpack.c.b16 %v93, %v91
    %v100 = vpack.c.b16 %v94, %v92
    %v101 = vpack.c.b16 %v97, %v95
    %v102 = vpack.c.b16 %v98, %v96
    %vm107 = vcmask 261120
    %v109 = vsel %vm107, %v82, 0
    %111 = vmatprep.subr.bf16.mxu0 %v100
    %112 = vmatpush1.bf16.msra.mxu0 %v99
    %113 = vmatprep.subr.bf16.mxu0 %v102
    %114 = vmatpush1.bf16.msra.mxu0 %v101
    %115 = vmatprep.subr.bf16.mxu0 0
    %116 = vmatpush1.bf16.msra.mxu0 0
    %117 = vmatprep.subr.bf16.mxu0 0
    %118 = vmatpush1.bf16.msra.mxu0 0
    %119 = vmatprep.subr.bf16.mxu0 0
    %120 = vmatpush1.bf16.msra.mxu0 0
    %121 = vmatprep.subr.bf16.mxu0 0
    %122 = vmatpush1.bf16.msra.mxu0 0
    %123 = vmatprep.subr.bf16.mxu0 0
    %124 = vmatpush1.bf16.msra.mxu0 0
    %125 = vmatprep.subr.bf16.mxu0 0
    %126 = vmatpush1.bf16.msra.mxu0 0
    %127 = vmatprep.subr.bf16.mxu0 0
    %128 = vmatpush1.bf16.msra.mxu0 0
    %129 = vmatprep.subr.bf16.mxu0 0
    %130 = vmatpush1.bf16.msra.mxu0 0
    %131 = vmatprep.subr.bf16.mxu0 0
    %132 = vmatpush1.bf16.msra.mxu0 0
    %133 = vmatprep.subr.bf16.mxu0 0
    %134 = vmatpush1.bf16.msra.mxu0 0
    %135 = vmatprep.subr.bf16.mxu0 0
    %136 = vmatpush1.bf16.msra.mxu0 0
    %137 = vmatprep.subr.bf16.mxu0 0
    %138 = vmatpush1.bf16.msra.mxu0 0
    %139 = vmatprep.subr.bf16.mxu0 0
    %140 = vmatpush1.bf16.msra.mxu0 0
    %141 = vmatprep.subr.bf16.mxu0 0
    %142 = vmatpush1.bf16.msra.mxu0 0
    %143 = vmatprep.mubr.bf16.mxu0 0
    %144 = vmatmul.mubr.bf16.gmra.mrb[0].mxu0 %v109
    %v145 = vpop.f32.mrb[0].mxu0
    %v146 = vadd.f32 0.0, %v145
    %v147 = vpop.f32.mrb[0].mxu0
    %v148 = vadd.f32 0.0, %v147
    %v149 = vpop.f32.mrb[0].mxu0
    %v150 = vadd.f32 0.0, %v149
    %v151 = vpop.f32.mrb[0].mxu0
    %v152 = vadd.f32 0.0, %v151
    %153 = vdwg.mxu0
    %v154 = vld [vmem:[%s2] sm:$0x1]
    %v156 = vlaneseq
    %v157 = vshrl.u32 %v156, 7
    %v158 = vsub.s32 0, %v157
    %v159 = vrot.slane %v154, %v158
    %v161 = vadd.f32 %v146, %v159
    %v162 = vadd.f32 %v150, %v159
    %v163 = vmul.f32 %v161, 0.01
    %v164 = vmul.f32 %v162, 0.01
    %v165 = vmax.f32 %v161, %v163
    %v166 = vmax.f32 %v162, %v164
    %v167 = vpack.c.bf16 %v166, %v165
    %v168 = vld [vmem:[#allocation7] sm:$0xf]
    %v169 = vld [vmem:[#allocation7 + $0x4] sm:$0xf]
    %v170 = vld [vmem:[#allocation7 + $0x8] sm:$0xf]
    %v171 = vld [vmem:[#allocation7 + $0xc] sm:$0xf]
    %v172 = vld [vmem:[#allocation7 + $0x10] sm:$0xf]
    %v173 = vld [vmem:[#allocation7 + $0x14] sm:$0xf]
    %v174 = vld [vmem:[#allocation7 + $0x18] sm:$0xf]
    %v175 = vld [vmem:[#allocation7 + $0x1c] sm:$0xf]
    %v176 = vld [vmem:[#allocation7 + $0x20] sm:$0xf]
    %v177 = vld [vmem:[#allocation7 + $0x24] sm:$0xf]
    %v178 = vld [vmem:[#allocation7 + $0x28] sm:$0xf]
    %v179 = vld [vmem:[#allocation7 + $0x2c] sm:$0xf]
    %v180 = vld [vmem:[#allocation7 + $0x30] sm:$0xf]
    %v181 = vld [vmem:[#allocation7 + $0x34] sm:$0xf]
    %v182 = vld [vmem:[#allocation7 + $0x38] sm:$0xf]
    %v183 = vld [vmem:[#allocation7 + $0x3c] sm:$0xf]
    %s184 = scalar_lea.vmem %s2, 1
    %v185 = vld [vmem:[%s184] sm:$0x1]
    %v187 = vlaneseq
    %v188 = vshrl.u32 %v187, 7
    %v189 = vsub.s32 0, %v188
    %v190 = vrot.slane %v185, %v189
    %v208 = vunpack.c.l.b16 %v168
    %v209 = vunpack.c.l.b16 %v169
    %v210 = vunpack.c.l.b16 %v170
    %v211 = vunpack.c.l.b16 %v171
    %v212 = vunpack.c.l.b16 %v172
    %v213 = vunpack.c.l.b16 %v173
    %v214 = vunpack.c.l.b16 %v174
    %v215 = vunpack.c.l.b16 %v175
    %v216 = vunpack.c.l.b16 %v176
    %v217 = vunpack.c.l.b16 %v177
    %v218 = vunpack.c.l.b16 %v178
    %v219 = vunpack.c.l.b16 %v179
    %v220 = vunpack.c.l.b16 %v180
    %v221 = vunpack.c.l.b16 %v181
    %v222 = vunpack.c.l.b16 %v182
    %v223 = vunpack.c.l.b16 %v183
    %v224 = vpack.c.b16 %v209, %v208
    %v225 = vpack.c.b16 %v211, %v210
    %v226 = vpack.c.b16 %v213, %v212
    %v227 = vpack.c.b16 %v215, %v214
    %v228 = vpack.c.b16 %v217, %v216
    %v229 = vpack.c.b16 %v219, %v218
    %v230 = vpack.c.b16 %v221, %v220
    %v231 = vpack.c.b16 %v223, %v222
    %240 = vmatprep.subr.bf16.mxu0 0
    %241 = vmatpush1.bf16.msra.mxu0 %v224
    %242 = vmatprep.subr.bf16.mxu0 0
    %243 = vmatpush1.bf16.msra.mxu0 %v225
    %244 = vmatprep.subr.bf16.mxu0 0
    %245 = vmatpush1.bf16.msra.mxu0 %v226
    %246 = vmatprep.subr.bf16.mxu0 0
    %247 = vmatpush1.bf16.msra.mxu0 %v227
    %248 = vmatprep.subr.bf16.mxu0 0
    %249 = vmatpush1.bf16.msra.mxu0 %v228
    %250 = vmatprep.subr.bf16.mxu0 0
    %251 = vmatpush1.bf16.msra.mxu0 %v229
    %252 = vmatprep.subr.bf16.mxu0 0
    %253 = vmatpush1.bf16.msra.mxu0 %v230
    %254 = vmatprep.subr.bf16.mxu0 0
    %255 = vmatpush1.bf16.msra.mxu0 %v231
    %256 = vmatprep.subr.bf16.mxu0 0
    %257 = vmatpush1.bf16.msra.mxu0 0
    %258 = vmatprep.subr.bf16.mxu0 0
    %259 = vmatpush1.bf16.msra.mxu0 0
    %260 = vmatprep.subr.bf16.mxu0 0
    %261 = vmatpush1.bf16.msra.mxu0 0
    %262 = vmatprep.subr.bf16.mxu0 0
    %263 = vmatpush1.bf16.msra.mxu0 0
    %264 = vmatprep.subr.bf16.mxu0 0
    %265 = vmatpush1.bf16.msra.mxu0 0
    %266 = vmatprep.subr.bf16.mxu0 0
    %267 = vmatpush1.bf16.msra.mxu0 0
    %268 = vmatprep.subr.bf16.mxu0 0
    %269 = vmatpush1.bf16.msra.mxu0 0
    %270 = vmatprep.subr.bf16.mxu0 0
    %271 = vmatpush1.bf16.msra.mxu0 0
    %272 = vmatprep.mubr.bf16.mxu0 0
    %273 = vmatmul.mubr.bf16.gmra.mrb[0].mxu0 %v167
    %v274 = vpop.f32.mrb[0].mxu0
    %v275 = vadd.f32 %v190, %v274
    %v276 = vpop.f32.mrb[0].mxu0
    %v277 = vpop.f32.mrb[0].mxu0
    %v278 = vadd.f32 %v190, %v277
    %v279 = vpop.f32.mrb[0].mxu0
    %280 = vdwg.mxu0
    %v281 = vmul.f32 %v275, 0.01
    %v282 = vmul.f32 %v278, 0.01
    %v283 = vmax.f32 %v275, %v281
    %v284 = vmax.f32 %v278, %v282
    %v285 = vpack.c.bf16 %v284, %v283
    %v286 = vld [vmem:[#allocation8] sm:$0xf]
    %v287 = vld [vmem:[#allocation8 + $0x4] sm:$0xf]
    %v288 = vld [vmem:[#allocation8 + $0x8] sm:$0xf]
    %v289 = vld [vmem:[#allocation8 + $0xc] sm:$0xf]
    %v290 = vld [vmem:[#allocation8 + $0x10] sm:$0xf]
    %v291 = vld [vmem:[#allocation8 + $0x14] sm:$0xf]
    %v292 = vld [vmem:[#allocation8 + $0x18] sm:$0xf]
    %v293 = vld [vmem:[#allocation8 + $0x1c] sm:$0xf]
    %v294 = vld [vmem:[#allocation8 + $0x20] sm:$0xf]
    %v295 = vld [vmem:[#allocation8 + $0x24] sm:$0xf]
    %v296 = vld [vmem:[#allocation8 + $0x28] sm:$0xf]
    %v297 = vld [vmem:[#allocation8 + $0x2c] sm:$0xf]
    %v298 = vld [vmem:[#allocation8 + $0x30] sm:$0xf]
    %v299 = vld [vmem:[#allocation8 + $0x34] sm:$0xf]
    %v300 = vld [vmem:[#allocation8 + $0x38] sm:$0xf]
    %v301 = vld [vmem:[#allocation8 + $0x3c] sm:$0xf]
    %v318 = vunpack.c.l.b16 %v286
    %v319 = vunpack.c.l.b16 %v287
    %v320 = vunpack.c.l.b16 %v288
    %v321 = vunpack.c.l.b16 %v289
    %v322 = vunpack.c.l.b16 %v290
    %v323 = vunpack.c.l.b16 %v291
    %v324 = vunpack.c.l.b16 %v292
    %v325 = vunpack.c.l.b16 %v293
    %v326 = vunpack.c.l.b16 %v294
    %v327 = vunpack.c.l.b16 %v295
    %v328 = vunpack.c.l.b16 %v296
    %v329 = vunpack.c.l.b16 %v297
    %v330 = vunpack.c.l.b16 %v298
    %v331 = vunpack.c.l.b16 %v299
    %v332 = vunpack.c.l.b16 %v300
    %v333 = vunpack.c.l.b16 %v301
    %v334 = vpack.c.b16 %v319, %v318
    %v335 = vpack.c.b16 %v321, %v320
    %v336 = vpack.c.b16 %v323, %v322
    %v337 = vpack.c.b16 %v325, %v324
    %v338 = vpack.c.b16 %v327, %v326
    %v339 = vpack.c.b16 %v329, %v328
    %v340 = vpack.c.b16 %v331, %v330
    %v341 = vpack.c.b16 %v333, %v332
    %350 = vmatprep.subr.bf16.mxu0 0
    %351 = vmatpush1.bf16.msra.mxu0 %v334
    %352 = vmatprep.subr.bf16.mxu0 0
    %353 = vmatpush1.bf16.msra.mxu0 %v335
    %354 = vmatprep.subr.bf16.mxu0 0
    %355 = vmatpush1.bf16.msra.mxu0 %v336
    %356 = vmatprep.subr.bf16.mxu0 0
    %357 = vmatpush1.bf16.msra.mxu0 %v337
    %358 = vmatprep.subr.bf16.mxu0 0
    %359 = vmatpush1.bf16.msra.mxu0 %v338
    %360 = vmatprep.subr.bf16.mxu0 0
    %361 = vmatpush1.bf16.msra.mxu0 %v339
    %362 = vmatprep.subr.bf16.mxu0 0
    %363 = vmatpush1.bf16.msra.mxu0 %v340
    %364 = vmatprep.subr.bf16.mxu0 0
    %365 = vmatpush1.bf16.msra.mxu0 %v341
    %366 = vmatprep.subr.bf16.mxu0 0
    %367 = vmatpush1.bf16.msra.mxu0 0
    %368 = vmatprep.subr.bf16.mxu0 0
    %369 = vmatpush1.bf16.msra.mxu0 0
    %370 = vmatprep.subr.bf16.mxu0 0
    %371 = vmatpush1.bf16.msra.mxu0 0
    %372 = vmatprep.subr.bf16.mxu0 0
    %373 = vmatpush1.bf16.msra.mxu0 0
    %374 = vmatprep.subr.bf16.mxu0 0
    %375 = vmatpush1.bf16.msra.mxu0 0
    %376 = vmatprep.subr.bf16.mxu0 0
    %377 = vmatpush1.bf16.msra.mxu0 0
    %378 = vmatprep.subr.bf16.mxu0 0
    %379 = vmatpush1.bf16.msra.mxu0 0
    %380 = vmatprep.subr.bf16.mxu0 0
    %381 = vmatpush1.bf16.msra.mxu0 0
    %382 = vmatprep.mubr.bf16.mxu0 0
    %383 = vmatmul.mubr.bf16.gmra.mrb[0].mxu0 %v285
    %v384 = vpop.f32.mrb[0].mxu0
    %v385 = vadd.f32 0.0, %v384
    %v386 = vpop.f32.mrb[0].mxu0
    %v387 = vpop.f32.mrb[0].mxu0
    %v388 = vadd.f32 0.0, %v387
    %v389 = vpop.f32.mrb[0].mxu0
    %390 = vdwg.mxu0
    %v391 = vadd.f32 %v283, %v148
    %v392 = vadd.f32 %v284, %v152
    %v393 = vmax.f32 %v391, 0.0
    %v394 = vmax.f32 %v392, 0.0
    %395 = vst [vmem:[#allocation10] sm:$0xff] %v393
    %396 = vst [vmem:[#allocation10 + $0x8] sm:$0xff] %v394
    %397 = vst [vmem:[#allocation11] sm:$0xff] %v385
    %398 = vst [vmem:[#allocation11 + $0x8] sm:$0xff] %v388
    // Predicated region
    $region38: #{fc_block_forward.1} parent=1 // pred_check
      _
    $region39: #{fc_block_forward.1} parent=1 // pred_check_branch
      %400 = sbr.rel (0) target = $region41
    $region40: #{fc_block_forward.1} parent=1 // pred_region
      %s402 = ssub.s32 256, 256
      %403 = vsyncadd [#allocation4], %s402
      %s404 = sshll.u32 [#allocation10], 4
      %s405 = int_to_ptr.vmem [resolvable:$true] %s404
      %410 = dma.vmem_to_hbm [thread:$0]  %s405, 256, %s5, [#allocation4], 128, 128, 8
    $region41: #{fc_block_forward.1} parent=1 // pred_fallthru
      _
    // Predicated region
    $region42: #{fc_block_forward.1} parent=1 // pred_check
      _
    $region43: #{fc_block_forward.1} parent=1 // pred_check_branch
      %412 = sbr.rel (0) target = $region45
    $region44: #{fc_block_forward.1} parent=1 // pred_region
      %s414 = ssub.s32 256, 256
      %415 = vsyncadd [#allocation12], %s414
      %s416 = sshll.u32 [#allocation11], 4
      %s417 = int_to_ptr.vmem [resolvable:$true] %s416
      %422 = dma.vmem_to_hbm [thread:$0]  %s417, 256, %s6, [#allocation12], 128, 128, 8
    $region45: #{fc_block_forward.1} parent=1 // pred_fallthru
      _
    // Predicated region
    $region46: #{fc_block_forward.1} parent=1 // pred_check
      _
    $region47: #{fc_block_forward.1} parent=1 // pred_check_branch
      %424 = sbr.rel (0) target = $region49
    $region48: #{fc_block_forward.1} parent=1 // pred_region
      %425 = dma.done [#allocation4], 256
    $region49: #{fc_block_forward.1} parent=1 // pred_fallthru
      _
    // Predicated region
    $region50: #{fc_block_forward.1} parent=1 // pred_check
      _
    $region51: #{fc_block_forward.1} parent=1 // pred_check_branch
      %427 = sbr.rel (0) target = $region53
    $region52: #{fc_block_forward.1} parent=1 // pred_region
      %428 = dma.done [#allocation12], 256
    $region53: #{fc_block_forward.1} parent=1 // pred_fallthru
      _
    %429 = vsyncpa [#allocation3], 1
    %430 = vsyncpa [#allocation6], 1
    %431 = vsyncpa [#allocation9], 1
    %432 = vsyncpa [#allocation4], 1
    %433 = vsyncpa [#allocation12], 1

</llo_original>
